<compile_context>
chip_gen: v7x
topology: tpu7x:2x2x1
jax: 0.10.0
libtpu: 0.0.40
codegen_flags: <defaults>
</compile_context>

<pallas_src>
import functools

import jax
import jax.numpy as jnp
from jax.experimental import pallas as pl
from jax.experimental.pallas import tpu as pltpu

IN_DIM = 784
LANE = 128  # hidden (64) and out (10) lane dims are zero-padded to 128


# ----------------------------- Pallas kernel -------------------------------

def _fused_net_kernel(x_ref, w1_ref, w2_ref, w3_ref, b_ref, o_ref):
    x = x_ref[...]                                # (bm, 784)
    b = b_ref[...]                                # (8, 128): rows 0/1/2 = b1/b2/b3

    # hidden layer 1: relu(x @ W1 + b1), W1 = V1 @ S1 @ Ut1 (padded to 128 lanes)
    h = jnp.dot(x, w1_ref[...], preferred_element_type=jnp.float32) + b[0:1, :]
    h = jnp.maximum(h, 0.0)

    # hidden layer 2: relu(h @ W2 + b2), W2 = V2 @ S2 @ Ut2 (padded)
    h = jnp.dot(h, w2_ref[...], preferred_element_type=jnp.float32) + b[1:2, :]
    h = jnp.maximum(h, 0.0)

    # output layer (dense, no activation)
    y = jnp.dot(h, w3_ref[...], preferred_element_type=jnp.float32) + b[2:3, :]
    o_ref[...] = y.astype(o_ref.dtype)


# ----------------------------- wrapper / packing ----------------------------

def _pad_to(a, shape):
    pads = [(0, s - d) for d, s in zip(a.shape, shape)]
    return jnp.pad(a, pads)


def pack_params(params):
    """Fold V@S@Ut into one dense weight per layer and zero-pad lane dims to
    128. Mathematically identical to the low-rank forward (all linear)."""
    h1, h2, out = params["h1"], params["h2"], params["out"]
    out_dim = out["W"].shape[1]

    w1 = (h1["V"] @ h1["S"] @ h1["Ut"]).astype(jnp.float32)      # (784, 64)
    w2 = (h2["V"] @ h2["S"] @ h2["Ut"]).astype(jnp.float32)      # (64, 64)
    w3 = out["W"].astype(jnp.float32)                            # (64, 10)

    # Biases packed into a single (8, 128) tile: rows 0/1/2 = b1/b2/b3.
    biases = jnp.zeros((8, LANE), jnp.float32)
    biases = biases.at[0, : h1["b"].shape[1]].set(h1["b"][0])
    biases = biases.at[1, : h2["b"].shape[1]].set(h2["b"][0])
    biases = biases.at[2, : out["b"].shape[1]].set(out["b"][0])

    packed = dict(
        w1=_pad_to(w1, (IN_DIM, LANE)),     # (784, 128)
        w2=_pad_to(w2, (LANE, LANE)),       # (128, 128)
        w3=_pad_to(w3, (LANE, LANE)),       # (128, 128)
        biases=biases,                      # (8, 128)
    )
    return packed, out_dim


def _resident(shape):
    # Weight tile: whole array, same block every grid step (stays in VMEM).
    return pl.BlockSpec(shape, lambda i: (0, 0))


def _round_up(x, m):
    return ((x + m - 1) // m) * m


@functools.partial(jax.jit, static_argnames=("out_dim", "block_m"))
def network_forward(packed, x, *, out_dim, block_m=1024):
    # x.view(-1, 784)
    x = x.reshape(-1, IN_DIM)
    if x.dtype != jnp.float32:
        x = x.astype(jnp.float32)
    batch = x.shape[0]

    # Batch tile: multiple of 8, capped at block_m. When batch >= 16, cap so
    # grid >= 2 steps and dimension_semantics=("parallel",) can spread the
    # batch over v7x's two TensorCores. No wrapper-side padding of x: Pallas
    # handles a partial last block; stale rows are never read back.
    if batch >= 16:
        bm = min(block_m, _round_up(pl.cdiv(batch, 2), 8))
    else:
        bm = min(block_m, _round_up(max(batch, 1), 8))
    grid_m = pl.cdiv(batch, bm)

    p = packed
    weight_bytes = sum(int(p[k].size) * 4 for k in ("w1", "w2", "w3", "biases"))
    # 2-deep pipelining on x and the output tile + resident weights + slack.
    vmem_bytes = 2 * bm * IN_DIM * 4 + 2 * bm * LANE * 4 + weight_bytes + (4 << 20)
    vmem_limit = min(max(vmem_bytes, 16 << 20), 32 << 20)

    out = pl.pallas_call(
        _fused_net_kernel,
        out_shape=jax.ShapeDtypeStruct((batch, LANE), jnp.float32),
        grid_spec=pltpu.PrefetchScalarGridSpec(
            num_scalar_prefetch=0,
            grid=(grid_m,),
            in_specs=[
                pl.BlockSpec((bm, IN_DIM), lambda i: (i, 0)),   # activations: tiled
                _resident(p["w1"].shape),
                _resident(p["w2"].shape),
                _resident(p["w3"].shape),
                _resident(p["biases"].shape),
            ],
            out_specs=pl.BlockSpec((bm, LANE), lambda i: (i, 0)),
        ),
        compiler_params=pltpu.CompilerParams(
            dimension_semantics=("parallel",),   # batch axis -> both TCs on v7x
            vmem_limit_bytes=vmem_limit,
        ),
    )(x, p["w1"], p["w2"], p["w3"], p["biases"])

    return out[:batch, :out_dim]


# ------------------------------ params & reference ---------------------------

def init_params(key, in_dim=IN_DIM, hidden=64, rank=16, out_dim=10):
    """Deterministic params mirroring the module's layer shapes:
    two low-rank hidden layers (V: in x r, S: r x r, Ut: r x out, bias: out)
    and one dense output layer (W: hidden x out_dim, bias: out_dim)."""
    keys = jax.random.split(key, 10)
    params = {}
    params["h1"] = dict(
        V=jax.random.normal(keys[0], (in_dim, rank), jnp.float32) * 0.05,
        S=jax.random.normal(keys[1], (rank, rank), jnp.float32) * 0.05,
        Ut=jax.random.normal(keys[2], (rank, hidden), jnp.float32) * 0.05,
        b=jax.random.normal(keys[3], (1, hidden), jnp.float32) * 0.01,
    )
    params["h2"] = dict(
        V=jax.random.normal(keys[4], (hidden, rank), jnp.float32) * 0.05,
        S=jax.random.normal(keys[5], (rank, rank), jnp.float32) * 0.05,
        Ut=jax.random.normal(keys[6], (rank, hidden), jnp.float32) * 0.05,
        b=jax.random.normal(keys[7], (1, hidden), jnp.float32) * 0.01,
    )
    params["out"] = dict(
        W=jax.random.normal(keys[8], (hidden, out_dim), jnp.float32) * 0.05,
        b=jax.random.normal(keys[9], (1, out_dim), jnp.float32) * 0.01,
    )
    return params


def reference_forward(params, x):
    x = x.reshape(-1, IN_DIM).astype(jnp.float32)
    for name in ("h1", "h2"):
        p = params[name]
        x = jnp.maximum(x @ p["V"] @ p["S"] @ p["Ut"] + p["b"], 0.0)
    return x @ params["out"]["W"] + params["out"]["b"]


if __name__ == "__main__":
    key = jax.random.PRNGKey(0)
    pkey, xkey = jax.random.split(key)
    params = init_params(pkey)
    packed, out_dim = pack_params(params)

    # MNIST-style NCHW input: (batch=8, channels=1, 28, 28) -> view(-1, 784)
    x = jax.random.normal(xkey, (8, 1, 28, 28), jnp.float32)

    out = network_forward(packed, x, out_dim=out_dim)
    out = jax.block_until_ready(out)

    ref = reference_forward(params, x)
    assert out.shape == (8, 10), out.shape
    assert jnp.allclose(out, ref, atol=1e-4, rtol=1e-4), "mismatch vs reference"

    print("KERNEL_OK")
</pallas_src>

<mosaic_0001>
module attributes {stable_mosaic.version = 11 : i64} {
  func.func @_fused_net_kernel(%arg0: i32, %arg1: memref<8x784xf32, #tpu.memory_space<vmem>>, %arg2: memref<784x128xf32, #tpu.memory_space<vmem>>, %arg3: memref<128x128xf32, #tpu.memory_space<vmem>>, %arg4: memref<128x128xf32, #tpu.memory_space<vmem>>, %arg5: memref<8x128xf32, #tpu.memory_space<vmem>>, %arg6: memref<8x128xf32, #tpu.memory_space<vmem>>) attributes {dimension_semantics = [#tpu.dimension_semantics<parallel>], iteration_bounds = array<i64: 1>, scalar_prefetch = 0 : i64, scratch_operands = 0 : i64, tpu.core_type = #tpu.core_type<tc>, window_params = [{transform_indices = @transform_0, window_bounds = array<i64: 8, 784>}, {pipeline_mode = #tpu.pipeline_mode<synchronous>, transform_indices = @transform_1, window_bounds = array<i64: 784, 128>}, {pipeline_mode = #tpu.pipeline_mode<synchronous>, transform_indices = @transform_2, window_bounds = array<i64: 128, 128>}, {pipeline_mode = #tpu.pipeline_mode<synchronous>, transform_indices = @transform_3, window_bounds = array<i64: 128, 128>}, {pipeline_mode = #tpu.pipeline_mode<synchronous>, transform_indices = @transform_4, window_bounds = array<i64: 8, 128>}, {transform_indices = @transform_5, window_bounds = array<i64: 8, 128>}]} {
    %c0 = arith.constant 0 : index
    %c0_0 = arith.constant 0 : index
    %0 = vector.load %arg1[%c0, %c0_0] : memref<8x784xf32, #tpu.memory_space<vmem>>, vector<8x784xf32>
    %c0_1 = arith.constant 0 : index
    %c0_2 = arith.constant 0 : index
    %1 = vector.load %arg5[%c0_1, %c0_2] : memref<8x128xf32, #tpu.memory_space<vmem>>, vector<8x128xf32>
    %c0_3 = arith.constant 0 : index
    %c0_4 = arith.constant 0 : index
    %2 = vector.load %arg2[%c0_3, %c0_4] : memref<784x128xf32, #tpu.memory_space<vmem>>, vector<784x128xf32>
    %cst = arith.constant dense<0.000000e+00> : vector<8x128xf32>
    %3 = tpu.matmul %0, %2, %cst {dimension_numbers = #tpu.dot_dimension_numbers<[1], [0], [0], [1], [0, 0, 1, 1], [], []>} : vector<8x784xf32>, vector<784x128xf32>, vector<8x128xf32> -> vector<8x128xf32>
    %4 = vector.extract_strided_slice %1 {offsets = [0, 0], sizes = [1, 128], strides = [1, 1]} : vector<8x128xf32> to vector<1x128xf32>
    %5 = vector.broadcast %4 : vector<1x128xf32> to vector<8x128xf32>
    %6 = arith.addf %3, %5 : vector<8x128xf32>
    %cst_5 = arith.constant 0.000000e+00 : f32
    %7 = vector.broadcast %cst_5 : f32 to vector<8x128xf32>
    %8 = arith.maximumf %6, %7 : vector<8x128xf32>
    %c0_6 = arith.constant 0 : index
    %c0_7 = arith.constant 0 : index
    %9 = vector.load %arg3[%c0_6, %c0_7] : memref<128x128xf32, #tpu.memory_space<vmem>>, vector<128x128xf32>
    %cst_8 = arith.constant dense<0.000000e+00> : vector<8x128xf32>
    %10 = tpu.matmul %8, %9, %cst_8 {dimension_numbers = #tpu.dot_dimension_numbers<[1], [0], [0], [1], [0, 0, 1, 1], [], []>} : vector<8x128xf32>, vector<128x128xf32>, vector<8x128xf32> -> vector<8x128xf32>
    %11 = vector.extract_strided_slice %1 {offsets = [1, 0], sizes = [1, 128], strides = [1, 1]} : vector<8x128xf32> to vector<1x128xf32>
    %12 = vector.broadcast %11 : vector<1x128xf32> to vector<8x128xf32>
    %13 = arith.addf %10, %12 : vector<8x128xf32>
    %cst_9 = arith.constant 0.000000e+00 : f32
    %14 = vector.broadcast %cst_9 : f32 to vector<8x128xf32>
    %15 = arith.maximumf %13, %14 : vector<8x128xf32>
    %c0_10 = arith.constant 0 : index
    %c0_11 = arith.constant 0 : index
    %16 = vector.load %arg4[%c0_10, %c0_11] : memref<128x128xf32, #tpu.memory_space<vmem>>, vector<128x128xf32>
    %cst_12 = arith.constant dense<0.000000e+00> : vector<8x128xf32>
    %17 = tpu.matmul %15, %16, %cst_12 {dimension_numbers = #tpu.dot_dimension_numbers<[1], [0], [0], [1], [0, 0, 1, 1], [], []>} : vector<8x128xf32>, vector<128x128xf32>, vector<8x128xf32> -> vector<8x128xf32>
    %18 = vector.extract_strided_slice %1 {offsets = [2, 0], sizes = [1, 128], strides = [1, 1]} : vector<8x128xf32> to vector<1x128xf32>
    %19 = vector.broadcast %18 : vector<1x128xf32> to vector<8x128xf32>
    %20 = arith.addf %17, %19 : vector<8x128xf32>
    %c0_13 = arith.constant 0 : index
    %c0_14 = arith.constant 0 : index
    %21 = vector.load %arg6[%c0_13, %c0_14] : memref<8x128xf32, #tpu.memory_space<vmem>>, vector<8x128xf32>
    tpu.vector_store %arg6[%c0_13, %c0_14], %20 {strides = array<i32>} : memref<8x128xf32, #tpu.memory_space<vmem>>, vector<8x128xf32>,
    return
  }
  func.func @transform_0(%arg0: i32) -> (i32, i32) {
    %c0_i32 = arith.constant 0 : i32
    %c0_i32_0 = arith.constant 0 : i32
    return %arg0, %c0_i32 : i32, i32
  }
  func.func @transform_1(%arg0: i32) -> (i32, i32) {
    %c0_i32 = arith.constant 0 : i32
    %c0_i32_0 = arith.constant 0 : i32
    %c0_i32_1 = arith.constant 0 : i32
    return %c0_i32, %c0_i32_0 : i32, i32
  }
  func.func @transform_2(%arg0: i32) -> (i32, i32) {
    %c0_i32 = arith.constant 0 : i32
    %c0_i32_0 = arith.constant 0 : i32
    %c0_i32_1 = arith.constant 0 : i32
    return %c0_i32, %c0_i32_0 : i32, i32
  }
  func.func @transform_3(%arg0: i32) -> (i32, i32) {
    %c0_i32 = arith.constant 0 : i32
    %c0_i32_0 = arith.constant 0 : i32
    %c0_i32_1 = arith.constant 0 : i32
    return %c0_i32, %c0_i32_0 : i32, i32
  }
  func.func @transform_4(%arg0: i32) -> (i32, i32) {
    %c0_i32 = arith.constant 0 : i32
    %c0_i32_0 = arith.constant 0 : i32
    %c0_i32_1 = arith.constant 0 : i32
    return %c0_i32, %c0_i32_0 : i32, i32
  }
  func.func @transform_5(%arg0: i32) -> (i32, i32) {
    %c0_i32 = arith.constant 0 : i32
    %c0_i32_0 = arith.constant 0 : i32
    return %arg0, %c0_i32 : i32, i32
  }
}

</mosaic_0001>

<llo_original>
// kernel: network_forward.1
$region0: #{network_forward.1}
  #allocation0 [shape = 'u32[]', space=smem, size = 0x4, offset = 0x4, fixed_abs, tag = 'smem constant byte address 0x4 - core index']
  #allocation1 [shape = 'u32[144,128]{1,0:T(1,128)}', space=vmem, size = 0x12000, scoped, tag = 'internal scratch']
  %s0 = inlined_call_operand.vmem [shape: f32[8,784], index: 0, kind: input, shape index: {}]
  %s1 = inlined_call_operand.vmem [shape: f32[784,128], index: 1, kind: input, shape index: {}]
  %s2 = inlined_call_operand.hbm [shape: f32[128,128], index: 2, kind: input, shape index: {}]
  %s3 = inlined_call_operand.hbm [shape: f32[128,128], index: 3, kind: input, shape index: {}]
  %s4 = inlined_call_operand.vmem [shape: f32[8,128], index: 4, kind: input, shape index: {}]
  %s5 = inlined_call_operand.hbm [shape: f32[8,128], index: 5, kind: output, shape index: {}]
  %s6 = sld [smem:[#allocation0]]
  $region38: #{network_forward.1} parent=0
    _
  %s8 = ssub.s32 1, %s6
  %s9 = scalar_select 0, %s8, %s6
  $region1: #{network_forward.1} parent=0
    #allocation2 [shape = 'u8[65536]{0}', space=vmem, size = 0x10000, scoped, tag = 'input window, operand 2, single buffered']
    #allocation3 [shape = 's32[1]{0}', space=sflag, size = 0x4, scoped, tag = 'scoped memory for network_forward.1']
    #allocation4 [shape = 's32[1]{0}', space=sflag, size = 0x4, scoped, tag = 'scoped memory for network_forward.1']
    #allocation5 [shape = 'u8[65536]{0}', space=vmem, size = 0x10000, scoped, tag = 'input window, operand 3, single buffered']
    #allocation6 [shape = 's32[1]{0}', space=sflag, size = 0x4, scoped, tag = 'scoped memory for network_forward.1']
    #allocation7 [shape = 'u8[4096]{0}', space=vmem, size = 0x1000, scoped, tag = 'output window, operand 0, single buffered']
    %10 = vsyncpa [#allocation3], 0
    %11 = vsyncpa [#allocation6], 0
    %12 = vsyncpa [#allocation4], 0
    // Predicated region
    $region2: #{network_forward.1} parent=1 // pred_check
      _
    $region3: #{network_forward.1} parent=1 // pred_check_branch
      %14 = sbr.rel (0) target = $region5
    $region4: #{network_forward.1} parent=1 // pred_region
      _
    $region5: #{network_forward.1} parent=1 // pred_fallthru
      _
    // Predicated region
    $region6: #{network_forward.1} parent=1 // pred_check
      _
    $region7: #{network_forward.1} parent=1 // pred_check_branch
      %16 = sbr.rel (0) target = $region9
    $region8: #{network_forward.1} parent=1 // pred_region
      _
    $region9: #{network_forward.1} parent=1 // pred_fallthru
      _
    // Predicated region
    $region10: #{network_forward.1} parent=1 // pred_check
      _
    $region11: #{network_forward.1} parent=1 // pred_check_branch
      %18 = sbr.rel (0) target = $region13
    $region12: #{network_forward.1} parent=1 // pred_region
      %s20 = ssub.s32 2048, 2048
      %21 = vsyncadd [#allocation3], %s20
      %s22 = sshll.u32 [#allocation2], 4
      %s23 = int_to_ptr.vmem [resolvable:$true] %s22
      %28 = dma.hbm_to_vmem [thread:$0]  %s2, 2048, %s23, [#allocation3], 128, 128, 8
    $region13: #{network_forward.1} parent=1 // pred_fallthru
      _
    // Predicated region
    $region14: #{network_forward.1} parent=1 // pred_check
      _
    $region15: #{network_forward.1} parent=1 // pred_check_branch
      %30 = sbr.rel (0) target = $region17
    $region16: #{network_forward.1} parent=1 // pred_region
      %s32 = ssub.s32 2048, 2048
      %33 = vsyncadd [#allocation6], %s32
      %s34 = sshll.u32 [#allocation5], 4
      %s35 = int_to_ptr.vmem [resolvable:$true] %s34
      %40 = dma.hbm_to_vmem [thread:$0]  %s3, 2048, %s35, [#allocation6], 128, 128, 8
    $region17: #{network_forward.1} parent=1 // pred_fallthru
      _
    // Predicated region
    $region18: #{network_forward.1} parent=1 // pred_check
      _
    $region19: #{network_forward.1} parent=1 // pred_check_branch
      %42 = sbr.rel (0) target = $region21
    $region20: #{network_forward.1} parent=1 // pred_region
      _
    $region21: #{network_forward.1} parent=1 // pred_fallthru
      _
    // Predicated region
    $region22: #{network_forward.1} parent=1 // pred_check
      _
    $region23: #{network_forward.1} parent=1 // pred_check_branch
      %44 = sbr.rel (0) target = $region25
    $region24: #{network_forward.1} parent=1 // pred_region
      %45 = dma.done [#allocation3], 2048
    $region25: #{network_forward.1} parent=1 // pred_fallthru
      _
    // Predicated region
    $region26: #{network_forward.1} parent=1 // pred_check
      _
    $region27: #{network_forward.1} parent=1 // pred_check_branch
      %47 = sbr.rel (0) target = $region29
    $region28: #{network_forward.1} parent=1 // pred_region
      %48 = dma.done [#allocation6], 2048
    $region29: #{network_forward.1} parent=1 // pred_fallthru
      _
    %v49 = vld [vmem:[%s0] sm:$0xff]
    %v50 = vld [vmem:[%s0 + $0x8] sm:$0xff]
    %v51 = vld [vmem:[%s0 + $0x10] sm:$0xff]
    %v52 = vld [vmem:[%s0 + $0x18] sm:$0xff]
    %v53 = vld [vmem:[%s0 + $0x20] sm:$0xff]
    %v54 = vld [vmem:[%s0 + $0x28] sm:$0xff]
    %v55 = vld [vmem:[%s0 + $0x30] sm:$0xff]
    %v56 = vld [vmem:[%s4] sm:$0xff]
    %v57 = vld [vmem:[%s1] sm:$0xff]
    %v58 = vld [vmem:[%s1 + $0x8] sm:$0xff]
    %v59 = vld [vmem:[%s1 + $0x10] sm:$0xff]
    %v60 = vld [vmem:[%s1 + $0x18] sm:$0xff]
    %v61 = vld [vmem:[%s1 + $0x20] sm:$0xff]
    %v62 = vld [vmem:[%s1 + $0x28] sm:$0xff]
    %v63 = vld [vmem:[%s1 + $0x30] sm:$0xff]
    %v64 = vld [vmem:[%s1 + $0x38] sm:$0xff]
    %v65 = vld [vmem:[%s1 + $0x40] sm:$0xff]
    %v66 = vld [vmem:[%s1 + $0x48] sm:$0xff]
    %v67 = vld [vmem:[%s1 + $0x50] sm:$0xff]
    %v68 = vld [vmem:[%s1 + $0x58] sm:$0xff]
    %v69 = vld [vmem:[%s1 + $0x60] sm:$0xff]
    %v70 = vld [vmem:[%s1 + $0x68] sm:$0xff]
    %v71 = vld [vmem:[%s1 + $0x70] sm:$0xff]
    %v72 = vld [vmem:[%s1 + $0x78] sm:$0xff]
    %v73 = vld [vmem:[%s1 + $0x80] sm:$0xff]
    %v74 = vld [vmem:[%s1 + $0x88] sm:$0xff]
    %v75 = vld [vmem:[%s1 + $0x90] sm:$0xff]
    %v76 = vld [vmem:[%s1 + $0x98] sm:$0xff]
    %v77 = vld [vmem:[%s1 + $0xa0] sm:$0xff]
    %v78 = vld [vmem:[%s1 + $0xa8] sm:$0xff]
    %v79 = vld [vmem:[%s1 + $0xb0] sm:$0xff]
    %v80 = vld [vmem:[%s1 + $0xb8] sm:$0xff]
    %v81 = vld [vmem:[%s1 + $0xc0] sm:$0xff]
    %v82 = vld [vmem:[%s1 + $0xc8] sm:$0xff]
    %v83 = vld [vmem:[%s1 + $0xd0] sm:$0xff]
    %v84 = vld [vmem:[%s1 + $0xd8] sm:$0xff]
    %v85 = vld [vmem:[%s1 + $0xe0] sm:$0xff]
    %v86 = vld [vmem:[%s1 + $0xe8] sm:$0xff]
    %v87 = vld [vmem:[%s1 + $0xf0] sm:$0xff]
    %v88 = vld [vmem:[%s1 + $0xf8] sm:$0xff]
    %v89 = vld [vmem:[%s1 + $0x100] sm:$0xff]
    %v90 = vld [vmem:[%s1 + $0x108] sm:$0xff]
    %v91 = vld [vmem:[%s1 + $0x110] sm:$0xff]
    %v92 = vld [vmem:[%s1 + $0x118] sm:$0xff]
    %v93 = vld [vmem:[%s1 + $0x120] sm:$0xff]
    %v94 = vld [vmem:[%s1 + $0x128] sm:$0xff]
    %v95 = vld [vmem:[%s1 + $0x130] sm:$0xff]
    %v96 = vld [vmem:[%s1 + $0x138] sm:$0xff]
    %v97 = vld [vmem:[%s1 + $0x140] sm:$0xff]
    %v98 = vld [vmem:[%s1 + $0x148] sm:$0xff]
    %v99 = vld [vmem:[%s1 + $0x150] sm:$0xff]
    %v100 = vld [vmem:[%s1 + $0x158] sm:$0xff]
    %v101 = vld [vmem:[%s1 + $0x160] sm:$0xff]
    %v102 = vld [vmem:[%s1 + $0x168] sm:$0xff]
    %v103 = vld [vmem:[%s1 + $0x170] sm:$0xff]
    %v104 = vld [vmem:[%s1 + $0x178] sm:$0xff]
    %v105 = vld [vmem:[%s1 + $0x180] sm:$0xff]
    %v106 = vld [vmem:[%s1 + $0x188] sm:$0xff]
    %v107 = vld [vmem:[%s1 + $0x190] sm:$0xff]
    %v108 = vld [vmem:[%s1 + $0x198] sm:$0xff]
    %v109 = vld [vmem:[%s1 + $0x1a0] sm:$0xff]
    %v110 = vld [vmem:[%s1 + $0x1a8] sm:$0xff]
    %v111 = vld [vmem:[%s1 + $0x1b0] sm:$0xff]
    %v112 = vld [vmem:[%s1 + $0x1b8] sm:$0xff]
    %v113 = vld [vmem:[%s1 + $0x1c0] sm:$0xff]
    %v114 = vld [vmem:[%s1 + $0x1c8] sm:$0xff]
    %v115 = vld [vmem:[%s1 + $0x1d0] sm:$0xff]
    %v116 = vld [vmem:[%s1 + $0x1d8] sm:$0xff]
    %v117 = vld [vmem:[%s1 + $0x1e0] sm:$0xff]
    %v118 = vld [vmem:[%s1 + $0x1e8] sm:$0xff]
    %v119 = vld [vmem:[%s1 + $0x1f0] sm:$0xff]
    %v120 = vld [vmem:[%s1 + $0x1f8] sm:$0xff]
    %v121 = vld [vmem:[%s1 + $0x200] sm:$0xff]
    %v122 = vld [vmem:[%s1 + $0x208] sm:$0xff]
    %v123 = vld [vmem:[%s1 + $0x210] sm:$0xff]
    %v124 = vld [vmem:[%s1 + $0x218] sm:$0xff]
    %v125 = vld [vmem:[%s1 + $0x220] sm:$0xff]
    %v126 = vld [vmem:[%s1 + $0x228] sm:$0xff]
    %v127 = vld [vmem:[%s1 + $0x230] sm:$0xff]
    %v128 = vld [vmem:[%s1 + $0x238] sm:$0xff]
    %v129 = vld [vmem:[%s1 + $0x240] sm:$0xff]
    %v130 = vld [vmem:[%s1 + $0x248] sm:$0xff]
    %v131 = vld [vmem:[%s1 + $0x250] sm:$0xff]
    %v132 = vld [vmem:[%s1 + $0x258] sm:$0xff]
    %v133 = vld [vmem:[%s1 + $0x260] sm:$0xff]
    %v134 = vld [vmem:[%s1 + $0x268] sm:$0xff]
    %v135 = vld [vmem:[%s1 + $0x270] sm:$0xff]
    %v136 = vld [vmem:[%s1 + $0x278] sm:$0xff]
    %v137 = vld [vmem:[%s1 + $0x280] sm:$0xff]
    %v138 = vld [vmem:[%s1 + $0x288] sm:$0xff]
    %v139 = vld [vmem:[%s1 + $0x290] sm:$0xff]
    %v140 = vld [vmem:[%s1 + $0x298] sm:$0xff]
    %v141 = vld [vmem:[%s1 + $0x2a0] sm:$0xff]
    %v142 = vld [vmem:[%s1 + $0x2a8] sm:$0xff]
    %v143 = vld [vmem:[%s1 + $0x2b0] sm:$0xff]
    %v144 = vld [vmem:[%s1 + $0x2b8] sm:$0xff]
    %v145 = vld [vmem:[%s1 + $0x2c0] sm:$0xff]
    %v146 = vld [vmem:[%s1 + $0x2c8] sm:$0xff]
    %v147 = vld [vmem:[%s1 + $0x2d0] sm:$0xff]
    %v148 = vld [vmem:[%s1 + $0x2d8] sm:$0xff]
    %v149 = vld [vmem:[%s1 + $0x2e0] sm:$0xff]
    %v150 = vld [vmem:[%s1 + $0x2e8] sm:$0xff]
    %v151 = vld [vmem:[%s1 + $0x2f0] sm:$0xff]
    %v152 = vld [vmem:[%s1 + $0x2f8] sm:$0xff]
    %v153 = vld [vmem:[%s1 + $0x300] sm:$0xff]
    %v154 = vld [vmem:[%s1 + $0x308] sm:$0xff]
    %v155 = vlaneseq
    %v156 = vshrl.u32 %v155, 7
    %v157 = vsub.s32 0, %v156
    %v158 = vrot.slane %v56, %v157
    %vm159 = vcmask 130048
    %v161 = vsel %vm159, %v55, 0
    %163 = vmatprep.subr.mxu0 0.0
    %164 = vmatpush1.msra.mxu0 %v57
    %165 = vmatprep.subr.mxu0 0.0
    %166 = vmatpush1.msra.mxu0 %v58
    %167 = vmatprep.subr.mxu0 0.0
    %168 = vmatpush1.msra.mxu0 %v59
    %169 = vmatprep.subr.mxu0 0.0
    %170 = vmatpush1.msra.mxu0 %v60
    %171 = vmatprep.subr.mxu0 0.0
    %172 = vmatpush1.msra.mxu0 %v61
    %173 = vmatprep.subr.mxu0 0.0
    %174 = vmatpush1.msra.mxu0 %v62
    %175 = vmatprep.subr.mxu0 0.0
    %176 = vmatpush1.msra.mxu0 %v63
    %177 = vmatprep.subr.mxu0 0.0
    %178 = vmatpush1.msra.mxu0 %v64
    %179 = vmatprep.subr.mxu0 0.0
    %180 = vmatpush1.msra.mxu0 %v65
    %181 = vmatprep.subr.mxu0 0.0
    %182 = vmatpush1.msra.mxu0 %v66
    %183 = vmatprep.subr.mxu0 0.0
    %184 = vmatpush1.msra.mxu0 %v67
    %185 = vmatprep.subr.mxu0 0.0
    %186 = vmatpush1.msra.mxu0 %v68
    %187 = vmatprep.subr.mxu0 0.0
    %188 = vmatpush1.msra.mxu0 %v69
    %189 = vmatprep.subr.mxu0 0.0
    %190 = vmatpush1.msra.mxu0 %v70
    %191 = vmatprep.subr.mxu0 0.0
    %192 = vmatpush1.msra.mxu0 %v71
    %193 = vmatprep.subr.mxu0 0.0
    %194 = vmatpush1.msra.mxu0 %v72
    %195 = vmatprep.subr.mxu0 0.0
    %196 = vmatpush1.msra.mxu0 %v73
    %197 = vmatprep.subr.mxu0 0.0
    %198 = vmatpush1.msra.mxu0 %v74
    %199 = vmatprep.subr.mxu0 0.0
    %200 = vmatpush1.msra.mxu0 %v75
    %201 = vmatprep.subr.mxu0 0.0
    %202 = vmatpush1.msra.mxu0 %v76
    %203 = vmatprep.subr.mxu0 0.0
    %204 = vmatpush1.msra.mxu0 %v77
    %205 = vmatprep.subr.mxu0 0.0
    %206 = vmatpush1.msra.mxu0 %v78
    %207 = vmatprep.subr.mxu0 0.0
    %208 = vmatpush1.msra.mxu0 %v79
    %209 = vmatprep.subr.mxu0 0.0
    %210 = vmatpush1.msra.mxu0 %v80
    %211 = vmatprep.subr.mxu0 0.0
    %212 = vmatpush1.msra.mxu0 %v81
    %213 = vmatprep.subr.mxu0 0.0
    %214 = vmatpush1.msra.mxu0 %v82
    %215 = vmatprep.subr.mxu0 0.0
    %216 = vmatpush1.msra.mxu0 %v83
    %217 = vmatprep.subr.mxu0 0.0
    %218 = vmatpush1.msra.mxu0 %v84
    %219 = vmatprep.subr.mxu0 0.0
    %220 = vmatpush1.msra.mxu0 %v85
    %221 = vmatprep.subr.mxu0 0.0
    %222 = vmatpush1.msra.mxu0 %v86
    %223 = vmatprep.subr.mxu0 0.0
    %224 = vmatpush1.msra.mxu0 %v87
    %225 = vmatprep.subr.mxu0 0.0
    %226 = vmatpush1.msra.mxu0 %v88
    %227 = vmatprep.mubr.f32.mxu0 %v50
    %228 = vmatmul.mubr.f32.gmra.mrb[0].mxu0 %v49
    %v229 = vpop.f32.mrb[0].mxu0
    %v230 = vadd.f32 %v158, %v229
    %v231 = vpop.f32.mrb[0].mxu0
    %232 = vdwg.mxu0
    %233 = vmatprep.subr.mxu0 0.0
    %234 = vmatpush1.msra.mxu0 %v89
    %235 = vmatprep.subr.mxu0 0.0
    %236 = vmatpush1.msra.mxu0 %v90
    %237 = vmatprep.subr.mxu0 0.0
    %238 = vmatpush1.msra.mxu0 %v91
    %239 = vmatprep.subr.mxu0 0.0
    %240 = vmatpush1.msra.mxu0 %v92
    %241 = vmatprep.subr.mxu0 0.0
    %242 = vmatpush1.msra.mxu0 %v93
    %243 = vmatprep.subr.mxu0 0.0
    %244 = vmatpush1.msra.mxu0 %v94
    %245 = vmatprep.subr.mxu0 0.0
    %246 = vmatpush1.msra.mxu0 %v95
    %247 = vmatprep.subr.mxu0 0.0
    %248 = vmatpush1.msra.mxu0 %v96
    %249 = vmatprep.subr.mxu0 0.0
    %250 = vmatpush1.msra.mxu0 %v97
    %251 = vmatprep.subr.mxu0 0.0
    %252 = vmatpush1.msra.mxu0 %v98
    %253 = vmatprep.subr.mxu0 0.0
    %254 = vmatpush1.msra.mxu0 %v99
    %255 = vmatprep.subr.mxu0 0.0
    %256 = vmatpush1.msra.mxu0 %v100
    %257 = vmatprep.subr.mxu0 0.0
    %258 = vmatpush1.msra.mxu0 %v101
    %259 = vmatprep.subr.mxu0 0.0
    %260 = vmatpush1.msra.mxu0 %v102
    %261 = vmatprep.subr.mxu0 0.0
    %262 = vmatpush1.msra.mxu0 %v103
    %263 = vmatprep.subr.mxu0 0.0
    %264 = vmatpush1.msra.mxu0 %v104
    %265 = vmatprep.subr.mxu0 0.0
    %266 = vmatpush1.msra.mxu0 %v105
    %267 = vmatprep.subr.mxu0 0.0
    %268 = vmatpush1.msra.mxu0 %v106
    %269 = vmatprep.subr.mxu0 0.0
    %270 = vmatpush1.msra.mxu0 %v107
    %271 = vmatprep.subr.mxu0 0.0
    %272 = vmatpush1.msra.mxu0 %v108
    %273 = vmatprep.subr.mxu0 0.0
    %274 = vmatpush1.msra.mxu0 %v109
    %275 = vmatprep.subr.mxu0 0.0
    %276 = vmatpush1.msra.mxu0 %v110
    %277 = vmatprep.subr.mxu0 0.0
    %278 = vmatpush1.msra.mxu0 %v111
    %279 = vmatprep.subr.mxu0 0.0
    %280 = vmatpush1.msra.mxu0 %v112
    %281 = vmatprep.subr.mxu0 0.0
    %282 = vmatpush1.msra.mxu0 %v113
    %283 = vmatprep.subr.mxu0 0.0
    %284 = vmatpush1.msra.mxu0 %v114
    %285 = vmatprep.subr.mxu0 0.0
    %286 = vmatpush1.msra.mxu0 %v115
    %287 = vmatprep.subr.mxu0 0.0
    %288 = vmatpush1.msra.mxu0 %v116
    %289 = vmatprep.subr.mxu0 0.0
    %290 = vmatpush1.msra.mxu0 %v117
    %291 = vmatprep.subr.mxu0 0.0
    %292 = vmatpush1.msra.mxu0 %v118
    %293 = vmatprep.subr.mxu0 0.0
    %294 = vmatpush1.msra.mxu0 %v119
    %295 = vmatprep.subr.mxu0 0.0
    %296 = vmatpush1.msra.mxu0 %v120
    %297 = vmatprep.mubr.f32.mxu0 %v52
    %298 = vmatmul.mubr.f32.gmra.mrb[0].mxu0 %v51
    %v299 = vpop.f32.mrb[0].mxu0
    %v300 = vadd.f32 %v230, %v299
    %v301 = vpop.f32.mrb[0].mxu0
    %302 = vdwg.mxu0
    %303 = vmatprep.subr.mxu0 0.0
    %304 = vmatpush1.msra.mxu0 %v121
    %305 = vmatprep.subr.mxu0 0.0
    %306 = vmatpush1.msra.mxu0 %v122
    %307 = vmatprep.subr.mxu0 0.0
    %308 = vmatpush1.msra.mxu0 %v123
    %309 = vmatprep.subr.mxu0 0.0
    %310 = vmatpush1.msra.mxu0 %v124
    %311 = vmatprep.subr.mxu0 0.0
    %312 = vmatpush1.msra.mxu0 %v125
    %313 = vmatprep.subr.mxu0 0.0
    %314 = vmatpush1.msra.mxu0 %v126
    %315 = vmatprep.subr.mxu0 0.0
    %316 = vmatpush1.msra.mxu0 %v127
    %317 = vmatprep.subr.mxu0 0.0
    %318 = vmatpush1.msra.mxu0 %v128
    %319 = vmatprep.subr.mxu0 0.0
    %320 = vmatpush1.msra.mxu0 %v129
    %321 = vmatprep.subr.mxu0 0.0
    %322 = vmatpush1.msra.mxu0 %v130
    %323 = vmatprep.subr.mxu0 0.0
    %324 = vmatpush1.msra.mxu0 %v131
    %325 = vmatprep.subr.mxu0 0.0
    %326 = vmatpush1.msra.mxu0 %v132
    %327 = vmatprep.subr.mxu0 0.0
    %328 = vmatpush1.msra.mxu0 %v133
    %329 = vmatprep.subr.mxu0 0.0
    %330 = vmatpush1.msra.mxu0 %v134
    %331 = vmatprep.subr.mxu0 0.0
    %332 = vmatpush1.msra.mxu0 %v135
    %333 = vmatprep.subr.mxu0 0.0
    %334 = vmatpush1.msra.mxu0 %v136
    %335 = vmatprep.subr.mxu0 0.0
    %336 = vmatpush1.msra.mxu0 %v137
    %337 = vmatprep.subr.mxu0 0.0
    %338 = vmatpush1.msra.mxu0 %v138
    %339 = vmatprep.subr.mxu0 0.0
    %340 = vmatpush1.msra.mxu0 %v139
    %341 = vmatprep.subr.mxu0 0.0
    %342 = vmatpush1.msra.mxu0 %v140
    %343 = vmatprep.subr.mxu0 0.0
    %344 = vmatpush1.msra.mxu0 %v141
    %345 = vmatprep.subr.mxu0 0.0
    %346 = vmatpush1.msra.mxu0 %v142
    %347 = vmatprep.subr.mxu0 0.0
    %348 = vmatpush1.msra.mxu0 %v143
    %349 = vmatprep.subr.mxu0 0.0
    %350 = vmatpush1.msra.mxu0 %v144
    %351 = vmatprep.subr.mxu0 0.0
    %352 = vmatpush1.msra.mxu0 %v145
    %353 = vmatprep.subr.mxu0 0.0
    %354 = vmatpush1.msra.mxu0 %v146
    %355 = vmatprep.subr.mxu0 0.0
    %356 = vmatpush1.msra.mxu0 %v147
    %357 = vmatprep.subr.mxu0 0.0
    %358 = vmatpush1.msra.mxu0 %v148
    %359 = vmatprep.subr.mxu0 0.0
    %360 = vmatpush1.msra.mxu0 %v149
    %361 = vmatprep.subr.mxu0 0.0
    %362 = vmatpush1.msra.mxu0 %v150
    %363 = vmatprep.subr.mxu0 0.0
    %364 = vmatpush1.msra.mxu0 %v151
    %365 = vmatprep.subr.mxu0 0.0
    %366 = vmatpush1.msra.mxu0 %v152
    %367 = vmatprep.mubr.f32.mxu0 %v54
    %368 = vmatmul.mubr.f32.gmra.mrb[0].mxu0 %v53
    %v369 = vpop.f32.mrb[0].mxu0
    %v370 = vadd.f32 %v300, %v369
    %v371 = vpop.f32.mrb[0].mxu0
    %372 = vdwg.mxu0
    %373 = vmatprep.subr.mxu0 0.0
    %374 = vmatpush1.msra.mxu0 %v153
    %375 = vmatprep.subr.mxu0 0.0
    %376 = vmatpush1.msra.mxu0 %v154
    %377 = vmatprep.subr.mxu0 0.0
    %378 = vmatpush1.msra.mxu0 0.0
    %379 = vmatprep.subr.mxu0 0.0
    %380 = vmatpush1.msra.mxu0 0.0
    %381 = vmatprep.subr.mxu0 0.0
    %382 = vmatpush1.msra.mxu0 0.0
    %383 = vmatprep.subr.mxu0 0.0
    %384 = vmatpush1.msra.mxu0 0.0
    %385 = vmatprep.subr.mxu0 0.0
    %386 = vmatpush1.msra.mxu0 0.0
    %387 = vmatprep.subr.mxu0 0.0
    %388 = vmatpush1.msra.mxu0 0.0
    %389 = vmatprep.subr.mxu0 0.0
    %390 = vmatpush1.msra.mxu0 0.0
    %391 = vmatprep.subr.mxu0 0.0
    %392 = vmatpush1.msra.mxu0 0.0
    %393 = vmatprep.subr.mxu0 0.0
    %394 = vmatpush1.msra.mxu0 0.0
    %395 = vmatprep.subr.mxu0 0.0
    %396 = vmatpush1.msra.mxu0 0.0
    %397 = vmatprep.subr.mxu0 0.0
    %398 = vmatpush1.msra.mxu0 0.0
    %399 = vmatprep.subr.mxu0 0.0
    %400 = vmatpush1.msra.mxu0 0.0
    %401 = vmatprep.subr.mxu0 0.0
    %402 = vmatpush1.msra.mxu0 0.0
    %403 = vmatprep.subr.mxu0 0.0
    %404 = vmatpush1.msra.mxu0 0.0
    %405 = vmatprep.subr.mxu0 0.0
    %406 = vmatpush1.msra.mxu0 0.0
    %407 = vmatprep.subr.mxu0 0.0
    %408 = vmatpush1.msra.mxu0 0.0
    %409 = vmatprep.subr.mxu0 0.0
    %410 = vmatpush1.msra.mxu0 0.0
    %411 = vmatprep.subr.mxu0 0.0
    %412 = vmatpush1.msra.mxu0 0.0
    %413 = vmatprep.subr.mxu0 0.0
    %414 = vmatpush1.msra.mxu0 0.0
    %415 = vmatprep.subr.mxu0 0.0
    %416 = vmatpush1.msra.mxu0 0.0
    %417 = vmatprep.subr.mxu0 0.0
    %418 = vmatpush1.msra.mxu0 0.0
    %419 = vmatprep.subr.mxu0 0.0
    %420 = vmatpush1.msra.mxu0 0.0
    %421 = vmatprep.subr.mxu0 0.0
    %422 = vmatpush1.msra.mxu0 0.0
    %423 = vmatprep.subr.mxu0 0.0
    %424 = vmatpush1.msra.mxu0 0.0
    %425 = vmatprep.subr.mxu0 0.0
    %426 = vmatpush1.msra.mxu0 0.0
    %427 = vmatprep.subr.mxu0 0.0
    %428 = vmatpush1.msra.mxu0 0.0
    %429 = vmatprep.subr.mxu0 0.0
    %430 = vmatpush1.msra.mxu0 0.0
    %431 = vmatprep.subr.mxu0 0.0
    %432 = vmatpush1.msra.mxu0 0.0
    %433 = vmatprep.subr.mxu0 0.0
    %434 = vmatpush1.msra.mxu0 0.0
    %435 = vmatprep.subr.mxu0 0.0
    %436 = vmatpush1.msra.mxu0 0.0
    %437 = vmatprep.mubr.f32.mxu0 0.0
    %438 = vmatmul.mubr.f32.gmra.mrb[0].mxu0 %v161
    %v439 = vpop.f32.mrb[0].mxu0
    %v440 = vadd.f32 %v370, %v439
    %v441 = vpop.f32.mrb[0].mxu0
    %442 = vdwg.mxu0
    %v443 = vmax.f32 %v440, 0.0
    %v444 = vld [vmem:[#allocation2] sm:$0xff]
    %v445 = vld [vmem:[#allocation2 + $0x8] sm:$0xff]
    %v446 = vld [vmem:[#allocation2 + $0x10] sm:$0xff]
    %v447 = vld [vmem:[#allocation2 + $0x18] sm:$0xff]
    %v448 = vld [vmem:[#allocation2 + $0x20] sm:$0xff]
    %v449 = vld [vmem:[#allocation2 + $0x28] sm:$0xff]
    %v450 = vld [vmem:[#allocation2 + $0x30] sm:$0xff]
    %v451 = vld [vmem:[#allocation2 + $0x38] sm:$0xff]
    %v452 = vld [vmem:[#allocation2 + $0x40] sm:$0xff]
    %v453 = vld [vmem:[#allocation2 + $0x48] sm:$0xff]
    %v454 = vld [vmem:[#allocation2 + $0x50] sm:$0xff]
    %v455 = vld [vmem:[#allocation2 + $0x58] sm:$0xff]
    %v456 = vld [vmem:[#allocation2 + $0x60] sm:$0xff]
    %v457 = vld [vmem:[#allocation2 + $0x68] sm:$0xff]
    %v458 = vld [vmem:[#allocation2 + $0x70] sm:$0xff]
    %v459 = vld [vmem:[#allocation2 + $0x78] sm:$0xff]
    %v460 = vlaneseq
    %v461 = vshrl.u32 %v460, 7
    %v462 = vsub.s32 1, %v461
    %v463 = vrot.slane %v56, %v462
    %464 = vmatprep.subr.mxu0 0.0
    %465 = vmatpush1.msra.mxu0 %v444
    %466 = vmatprep.subr.mxu0 0.0
    %467 = vmatpush1.msra.mxu0 %v445
    %468 = vmatprep.subr.mxu0 0.0
    %469 = vmatpush1.msra.mxu0 %v446
    %470 = vmatprep.subr.mxu0 0.0
    %471 = vmatpush1.msra.mxu0 %v447
    %472 = vmatprep.subr.mxu0 0.0
    %473 = vmatpush1.msra.mxu0 %v448
    %474 = vmatprep.subr.mxu0 0.0
    %475 = vmatpush1.msra.mxu0 %v449
    %476 = vmatprep.subr.mxu0 0.0
    %477 = vmatpush1.msra.mxu0 %v450
    %478 = vmatprep.subr.mxu0 0.0
    %479 = vmatpush1.msra.mxu0 %v451
    %480 = vmatprep.subr.mxu0 0.0
    %481 = vmatpush1.msra.mxu0 %v452
    %482 = vmatprep.subr.mxu0 0.0
    %483 = vmatpush1.msra.mxu0 %v453
    %484 = vmatprep.subr.mxu0 0.0
    %485 = vmatpush1.msra.mxu0 %v454
    %486 = vmatprep.subr.mxu0 0.0
    %487 = vmatpush1.msra.mxu0 %v455
    %488 = vmatprep.subr.mxu0 0.0
    %489 = vmatpush1.msra.mxu0 %v456
    %490 = vmatprep.subr.mxu0 0.0
    %491 = vmatpush1.msra.mxu0 %v457
    %492 = vmatprep.subr.mxu0 0.0
    %493 = vmatpush1.msra.mxu0 %v458
    %494 = vmatprep.subr.mxu0 0.0
    %495 = vmatpush1.msra.mxu0 %v459
    %496 = vmatprep.subr.mxu0 0.0
    %497 = vmatpush1.msra.mxu0 0.0
    %498 = vmatprep.subr.mxu0 0.0
    %499 = vmatpush1.msra.mxu0 0.0
    %500 = vmatprep.subr.mxu0 0.0
    %501 = vmatpush1.msra.mxu0 0.0
    %502 = vmatprep.subr.mxu0 0.0
    %503 = vmatpush1.msra.mxu0 0.0
    %504 = vmatprep.subr.mxu0 0.0
    %505 = vmatpush1.msra.mxu0 0.0
    %506 = vmatprep.subr.mxu0 0.0
    %507 = vmatpush1.msra.mxu0 0.0
    %508 = vmatprep.subr.mxu0 0.0
    %509 = vmatpush1.msra.mxu0 0.0
    %510 = vmatprep.subr.mxu0 0.0
    %511 = vmatpush1.msra.mxu0 0.0
    %512 = vmatprep.subr.mxu0 0.0
    %513 = vmatpush1.msra.mxu0 0.0
    %514 = vmatprep.subr.mxu0 0.0
    %515 = vmatpush1.msra.mxu0 0.0
    %516 = vmatprep.subr.mxu0 0.0
    %517 = vmatpush1.msra.mxu0 0.0
    %518 = vmatprep.subr.mxu0 0.0
    %519 = vmatpush1.msra.mxu0 0.0
    %520 = vmatprep.subr.mxu0 0.0
    %521 = vmatpush1.msra.mxu0 0.0
    %522 = vmatprep.subr.mxu0 0.0
    %523 = vmatpush1.msra.mxu0 0.0
    %524 = vmatprep.subr.mxu0 0.0
    %525 = vmatpush1.msra.mxu0 0.0
    %526 = vmatprep.subr.mxu0 0.0
    %527 = vmatpush1.msra.mxu0 0.0
    %528 = vmatprep.mubr.f32.mxu0 0.0
    %529 = vmatmul.mubr.f32.gmra.mrb[0].mxu0 %v443
    %v530 = vpop.f32.mrb[0].mxu0
    %v531 = vadd.f32 %v463, %v530
    %v532 = vpop.f32.mrb[0].mxu0
    %533 = vdwg.mxu0
    %v534 = vmax.f32 %v531, 0.0
    %v535 = vld [vmem:[#allocation5] sm:$0xff]
    %v536 = vld [vmem:[#allocation5 + $0x8] sm:$0xff]
    %v537 = vld [vmem:[#allocation5 + $0x10] sm:$0xff]
    %v538 = vld [vmem:[#allocation5 + $0x18] sm:$0xff]
    %v539 = vld [vmem:[#allocation5 + $0x20] sm:$0xff]
    %v540 = vld [vmem:[#allocation5 + $0x28] sm:$0xff]
    %v541 = vld [vmem:[#allocation5 + $0x30] sm:$0xff]
    %v542 = vld [vmem:[#allocation5 + $0x38] sm:$0xff]
    %v543 = vld [vmem:[#allocation5 + $0x40] sm:$0xff]
    %v544 = vld [vmem:[#allocation5 + $0x48] sm:$0xff]
    %v545 = vld [vmem:[#allocation5 + $0x50] sm:$0xff]
    %v546 = vld [vmem:[#allocation5 + $0x58] sm:$0xff]
    %v547 = vld [vmem:[#allocation5 + $0x60] sm:$0xff]
    %v548 = vld [vmem:[#allocation5 + $0x68] sm:$0xff]
    %v549 = vld [vmem:[#allocation5 + $0x70] sm:$0xff]
    %v550 = vld [vmem:[#allocation5 + $0x78] sm:$0xff]
    %v551 = vlaneseq
    %v552 = vshrl.u32 %v551, 7
    %v553 = vsub.s32 2, %v552
    %v554 = vrot.slane %v56, %v553
    %555 = vmatprep.subr.mxu0 0.0
    %556 = vmatpush1.msra.mxu0 %v535
    %557 = vmatprep.subr.mxu0 0.0
    %558 = vmatpush1.msra.mxu0 %v536
    %559 = vmatprep.subr.mxu0 0.0
    %560 = vmatpush1.msra.mxu0 %v537
    %561 = vmatprep.subr.mxu0 0.0
    %562 = vmatpush1.msra.mxu0 %v538
    %563 = vmatprep.subr.mxu0 0.0
    %564 = vmatpush1.msra.mxu0 %v539
    %565 = vmatprep.subr.mxu0 0.0
    %566 = vmatpush1.msra.mxu0 %v540
    %567 = vmatprep.subr.mxu0 0.0
    %568 = vmatpush1.msra.mxu0 %v541
    %569 = vmatprep.subr.mxu0 0.0
    %570 = vmatpush1.msra.mxu0 %v542
    %571 = vmatprep.subr.mxu0 0.0
    %572 = vmatpush1.msra.mxu0 %v543
    %573 = vmatprep.subr.mxu0 0.0
    %574 = vmatpush1.msra.mxu0 %v544
    %575 = vmatprep.subr.mxu0 0.0
    %576 = vmatpush1.msra.mxu0 %v545
    %577 = vmatprep.subr.mxu0 0.0
    %578 = vmatpush1.msra.mxu0 %v546
    %579 = vmatprep.subr.mxu0 0.0
    %580 = vmatpush1.msra.mxu0 %v547
    %581 = vmatprep.subr.mxu0 0.0
    %582 = vmatpush1.msra.mxu0 %v548
    %583 = vmatprep.subr.mxu0 0.0
    %584 = vmatpush1.msra.mxu0 %v549
    %585 = vmatprep.subr.mxu0 0.0
    %586 = vmatpush1.msra.mxu0 %v550
    %587 = vmatprep.subr.mxu0 0.0
    %588 = vmatpush1.msra.mxu0 0.0
    %589 = vmatprep.subr.mxu0 0.0
    %590 = vmatpush1.msra.mxu0 0.0
    %591 = vmatprep.subr.mxu0 0.0
    %592 = vmatpush1.msra.mxu0 0.0
    %593 = vmatprep.subr.mxu0 0.0
    %594 = vmatpush1.msra.mxu0 0.0
    %595 = vmatprep.subr.mxu0 0.0
    %596 = vmatpush1.msra.mxu0 0.0
    %597 = vmatprep.subr.mxu0 0.0
    %598 = vmatpush1.msra.mxu0 0.0
    %599 = vmatprep.subr.mxu0 0.0
    %600 = vmatpush1.msra.mxu0 0.0
    %601 = vmatprep.subr.mxu0 0.0
    %602 = vmatpush1.msra.mxu0 0.0
    %603 = vmatprep.subr.mxu0 0.0
    %604 = vmatpush1.msra.mxu0 0.0
    %605 = vmatprep.subr.mxu0 0.0
    %606 = vmatpush1.msra.mxu0 0.0
    %607 = vmatprep.subr.mxu0 0.0
    %608 = vmatpush1.msra.mxu0 0.0
    %609 = vmatprep.subr.mxu0 0.0
    %610 = vmatpush1.msra.mxu0 0.0
    %611 = vmatprep.subr.mxu0 0.0
    %612 = vmatpush1.msra.mxu0 0.0
    %613 = vmatprep.subr.mxu0 0.0
    %614 = vmatpush1.msra.mxu0 0.0
    %615 = vmatprep.subr.mxu0 0.0
    %616 = vmatpush1.msra.mxu0 0.0
    %617 = vmatprep.subr.mxu0 0.0
    %618 = vmatpush1.msra.mxu0 0.0
    %619 = vmatprep.mubr.f32.mxu0 0.0
    %620 = vmatmul.mubr.f32.gmra.mrb[0].mxu0 %v534
    %v621 = vpop.f32.mrb[0].mxu0
    %v622 = vadd.f32 %v554, %v621
    %v623 = vpop.f32.mrb[0].mxu0
    %624 = vdwg.mxu0
    %625 = vst [vmem:[#allocation7] sm:$0xff] %v622
    // Predicated region
    $region30: #{network_forward.1} parent=1 // pred_check
      _
    $region31: #{network_forward.1} parent=1 // pred_check_branch
      %627 = sbr.rel (0) target = $region33
    $region32: #{network_forward.1} parent=1 // pred_region
      %s629 = ssub.s32 128, 128
      %630 = vsyncadd [#allocation4], %s629
      %s632 = sshll.u32 [#allocation7], 4
      %s633 = int_to_ptr.vmem [resolvable:$true] %s632
      %635 = dma.vmem_to_hbm [thread:$0]  %s633, 128, %s5, [#allocation4]
    $region33: #{network_forward.1} parent=1 // pred_fallthru
      _
    // Predicated region
    $region34: #{network_forward.1} parent=1 // pred_check
      _
    $region35: #{network_forward.1} parent=1 // pred_check_branch
      %637 = sbr.rel (0) target = $region37
    $region36: #{network_forward.1} parent=1 // pred_region
      %638 = dma.done [#allocation4], 128
    $region37: #{network_forward.1} parent=1 // pred_fallthru
      _
    %639 = vsyncpa [#allocation3], 1
    %640 = vsyncpa [#allocation6], 1
    %641 = vsyncpa [#allocation4], 1

</llo_original>
